<compile_context>
chip_gen: v7x
topology: tpu7x:2x2x1
jax: 0.10.0
libtpu: 0.0.40
codegen_flags: <defaults>
</compile_context>

<pallas_src>
import functools
import math

import jax
import jax.numpy as jnp
from jax.experimental import pallas as pl
from jax.experimental.pallas import tpu as pltpu

_LANES = 128
_MAX_TILE_ROWS = 4096  # 4096 * 128 * 4B = 2 MiB per f32 block


def _round_up(n, m):
    return (n + m - 1) // m * m


# ----------------------------------------------------------------------------
# Kernels
# ----------------------------------------------------------------------------
def _dropout_prng_kernel(seed_ref, x_ref, o_ref, *, threshold, scale):
    """TPU path: in-kernel hardware PRNG, per-block seed."""
    # Per-block seed -> independent Bernoulli masks per tile.
    pltpu.prng_seed(seed_ref[0] + pl.program_id(0))
    bits = pltpu.prng_random_bits(x_ref.shape)
    if bits.dtype != jnp.uint32:
        bits = pltpu.bitcast(bits, jnp.uint32)
    keep = bits < jnp.uint32(threshold)
    # In-register f32 math (v5e has no bf16 VALU); HBM traffic stays at the
    # input dtype width.
    xf = x_ref[...].astype(jnp.float32)
    o_ref[...] = jnp.where(keep, xf * scale, 0.0).astype(o_ref.dtype)


def _dropout_bits_kernel(x_ref, bits_ref, o_ref, *, threshold, scale):
    """Portable path: random bits streamed in as a tiled input."""
    keep = bits_ref[...] < jnp.uint32(threshold)
    xf = x_ref[...].astype(jnp.float32)
    o_ref[...] = jnp.where(keep, xf * scale, 0.0).astype(o_ref.dtype)


# ----------------------------------------------------------------------------
# Wrapper
# ----------------------------------------------------------------------------
def _pack_2d(x):
    """Flatten to a lane-dense (rows, 128) slab padded to a whole number of tiles."""
    total = math.prod(x.shape)
    rows = (total + _LANES - 1) // _LANES
    tile_rows = min(_MAX_TILE_ROWS, _round_up(rows, 8))  # (8,128) tiling constraint
    rows_p = _round_up(rows, tile_rows)
    padded = rows_p * _LANES
    flat = x.reshape(-1)
    if padded != total:
        flat = jnp.pad(flat, (0, padded - total))
    return flat.reshape(rows_p, _LANES), total, tile_rows


def dropout(x, p=0.5, seed=0, training=True):
    """Inverted dropout matching the reference PyTorch module's forward."""
    if p < 0.0 or p > 1.0:
        raise ValueError(
            "Dropout prob has to be between 0 and 1, but got {}".format(p))
    if not training or p == 0.0:
        return x
    if p == 1.0:
        return jnp.zeros_like(x)

    keep_prob = 1.0 - p
    threshold = min(int(round(keep_prob * 2.0 ** 32)), 2 ** 32 - 1)
    scale = float(1.0 / keep_prob)

    orig_shape = x.shape
    x2, total, tile_rows = _pack_2d(x)
    rows_p = x2.shape[0]
    grid = (rows_p // tile_rows,)
    block = (tile_rows, _LANES)

    if jax.default_backend() == "tpu":
        kernel = functools.partial(
            _dropout_prng_kernel, threshold=threshold, scale=scale)
        seed_arr = jnp.array([seed], dtype=jnp.int32)
        out2 = pl.pallas_call(
            kernel,
            out_shape=jax.ShapeDtypeStruct(x2.shape, x2.dtype),
            grid_spec=pltpu.PrefetchScalarGridSpec(
                num_scalar_prefetch=1,
                grid=grid,
                in_specs=[pl.BlockSpec(block, lambda i, seed_ref: (i, 0))],
                out_specs=pl.BlockSpec(block, lambda i, seed_ref: (i, 0)),
            ),
            compiler_params=pltpu.CompilerParams(
                dimension_semantics=("parallel",)),
        )(seed_arr, x2)
    else:
        # TODO(synk): pltpu.prng_seed / prng_random_bits have no lowering off
        # TPU (CPU / interpret); stream host-generated bits through the same
        # tiled pipeline instead.
        bits = jax.random.bits(jax.random.PRNGKey(seed), x2.shape, jnp.uint32)
        kernel = functools.partial(
            _dropout_bits_kernel, threshold=threshold, scale=scale)
        out2 = pl.pallas_call(
            kernel,
            out_shape=jax.ShapeDtypeStruct(x2.shape, x2.dtype),
            grid=grid,
            in_specs=[
                pl.BlockSpec(block, lambda i: (i, 0)),
                pl.BlockSpec(block, lambda i: (i, 0)),
            ],
            out_specs=pl.BlockSpec(block, lambda i: (i, 0)),
            compiler_params=pltpu.CompilerParams(
                dimension_semantics=("parallel",)),
        )(x2, bits)

    out_flat = out2.reshape(-1)
    if out_flat.shape[0] != total:
        out_flat = out_flat[:total]
    return out_flat.reshape(orig_shape)


# ----------------------------------------------------------------------------
# Self-test
# ----------------------------------------------------------------------------
if __name__ == "__main__":
    key = jax.random.PRNGKey(0)
    # Small NCHW input consistent with the module being a generic layer.
    x = jax.random.normal(key, (2, 4, 16, 16), dtype=jnp.float32)

    p = 0.5
    y = jax.block_until_ready(dropout(x, p=p, seed=0, training=True))

    assert y.shape == x.shape and y.dtype == x.dtype
    # Kept elements are exactly x / (1 - p); dropped elements are 0.
    kept = y != 0.0
    scaled = x / (1.0 - p)
    assert bool(jnp.all(jnp.where(kept, jnp.abs(y - scaled) < 1e-5, y == 0.0)))
    keep_frac = float(jnp.mean(kept.astype(jnp.float32)))
    assert 0.3 < keep_frac < 0.7, keep_frac  # ~0.5 expected

    # Eval mode is identity.
    y_eval = jax.block_until_ready(dropout(x, p=p, training=False))
    assert bool(jnp.all(y_eval == x))

    print("KERNEL_OK")
</pallas_src>

<mosaic_0001>
module attributes {stable_mosaic.version = 11 : i64} {
  func.func @_dropout_bits_kernel(%arg0: i32, %arg1: memref<16x128xf32, #tpu.memory_space<vmem>>, %arg2: memref<16x128xi32, #tpu.memory_space<vmem>>, %arg3: memref<16x128xf32, #tpu.memory_space<vmem>>) attributes {dimension_semantics = [#tpu.dimension_semantics<parallel>], iteration_bounds = array<i64: 1>, scalar_prefetch = 0 : i64, scratch_operands = 0 : i64, tpu.core_type = #tpu.core_type<tc>, window_params = [{transform_indices = @transform_0, window_bounds = array<i64: 16, 128>}, {transform_indices = @transform_1, window_bounds = array<i64: 16, 128>}, {transform_indices = @transform_2, window_bounds = array<i64: 16, 128>}]} {
    %c0 = arith.constant 0 : index
    %c0_0 = arith.constant 0 : index
    %0 = vector.load %arg2[%c0, %c0_0] : memref<16x128xi32, #tpu.memory_space<vmem>>, vector<16x128xi32>
    %c-2147483648_i32 = arith.constant -2147483648 : i32
    %1 = vector.broadcast %c-2147483648_i32 : i32 to vector<16x128xi32>
    %2 = arith.cmpi ult, %0, %1 : vector<16x128xi32>
    %c0_1 = arith.constant 0 : index
    %c0_2 = arith.constant 0 : index
    %3 = vector.load %arg1[%c0_1, %c0_2] : memref<16x128xf32, #tpu.memory_space<vmem>>, vector<16x128xf32>
    %cst = arith.constant 2.000000e+00 : f32
    %4 = vector.broadcast %cst : f32 to vector<16x128xf32>
    %5 = arith.mulf %3, %4 : vector<16x128xf32>
    %cst_3 = arith.constant 0.000000e+00 : f32
    %6 = vector.broadcast %cst_3 : f32 to vector<16x128xf32>
    %7 = arith.select %2, %5, %6 : vector<16x128xi1>, vector<16x128xf32>
    %c0_4 = arith.constant 0 : index
    %c0_5 = arith.constant 0 : index
    %8 = vector.load %arg3[%c0_4, %c0_5] : memref<16x128xf32, #tpu.memory_space<vmem>>, vector<16x128xf32>
    tpu.vector_store %arg3[%c0_4, %c0_5], %7 {strides = array<i32>} : memref<16x128xf32, #tpu.memory_space<vmem>>, vector<16x128xf32>,
    return
  }
  func.func @transform_0(%arg0: i32) -> (i32, i32) {
    %c0_i32 = arith.constant 0 : i32
    %c0_i32_0 = arith.constant 0 : i32
    return %arg0, %c0_i32 : i32, i32
  }
  func.func @transform_1(%arg0: i32) -> (i32, i32) {
    %c0_i32 = arith.constant 0 : i32
    %c0_i32_0 = arith.constant 0 : i32
    return %arg0, %c0_i32 : i32, i32
  }
  func.func @transform_2(%arg0: i32) -> (i32, i32) {
    %c0_i32 = arith.constant 0 : i32
    %c0_i32_0 = arith.constant 0 : i32
    return %arg0, %c0_i32 : i32, i32
  }
}

</mosaic_0001>

<llo_original>
// kernel: tpu_custom_call.1
$region0: #{tpu_custom_call.1}
  #allocation0 [shape = 'u32[]', space=smem, size = 0x4, offset = 0x4, fixed_abs, tag = 'smem constant byte address 0x4 - core index']
  #allocation1 [shape = 'u32[144,128]{1,0:T(1,128)}', space=vmem, size = 0x12000, scoped, tag = 'internal scratch']
  %s0 = inlined_call_operand.hbm [shape: f32[16,128], index: 0, kind: input, shape index: {}]
  %s1 = inlined_call_operand.hbm [shape: u32[16,128], index: 1, kind: input, shape index: {}]
  %s2 = inlined_call_operand.hbm [shape: f32[16,128], index: 2, kind: output, shape index: {}]
  %s3 = sld [smem:[#allocation0]]
  $region26: #{tpu_custom_call.1} parent=0
    _
  %s5 = ssub.s32 1, %s3
  %s6 = scalar_select 0, %s5, %s3
  $region1: #{tpu_custom_call.1} parent=0
    #allocation2 [shape = 'u8[8192]{0}', space=vmem, size = 0x2000, scoped, tag = 'input window, operand 0, single buffered']
    #allocation3 [shape = 's32[1]{0}', space=sflag, size = 0x4, scoped, tag = 'scoped memory for tpu_custom_call.1']
    #allocation4 [shape = 's32[1]{0}', space=sflag, size = 0x4, scoped, tag = 'scoped memory for tpu_custom_call.1']
    #allocation5 [shape = 'u8[8192]{0}', space=vmem, size = 0x2000, scoped, tag = 'input window, operand 1, single buffered']
    #allocation6 [shape = 's32[1]{0}', space=sflag, size = 0x4, scoped, tag = 'scoped memory for tpu_custom_call.1']
    #allocation7 [shape = 'u8[8192]{0}', space=vmem, size = 0x2000, scoped, tag = 'output window, operand 0, single buffered']
    %7 = vsyncpa [#allocation3], 0
    %8 = vsyncpa [#allocation6], 0
    %9 = vsyncpa [#allocation4], 0
    // Predicated region
    $region2: #{tpu_custom_call.1} parent=1 // pred_check
      _
    $region3: #{tpu_custom_call.1} parent=1 // pred_check_branch
      %11 = sbr.rel (0) target = $region5
    $region4: #{tpu_custom_call.1} parent=1 // pred_region
      %s13 = ssub.s32 256, 256
      %14 = vsyncadd [#allocation3], %s13
      %s15 = sshll.u32 [#allocation2], 4
      %s16 = int_to_ptr.vmem [resolvable:$true] %s15
      %21 = dma.hbm_to_vmem [thread:$0]  %s0, 256, %s16, [#allocation3], 128, 128, 8
    $region5: #{tpu_custom_call.1} parent=1 // pred_fallthru
      _
    // Predicated region
    $region6: #{tpu_custom_call.1} parent=1 // pred_check
      _
    $region7: #{tpu_custom_call.1} parent=1 // pred_check_branch
      %23 = sbr.rel (0) target = $region9
    $region8: #{tpu_custom_call.1} parent=1 // pred_region
      %s25 = ssub.s32 256, 256
      %26 = vsyncadd [#allocation6], %s25
      %s27 = sshll.u32 [#allocation5], 4
      %s28 = int_to_ptr.vmem [resolvable:$true] %s27
      %33 = dma.hbm_to_vmem [thread:$0]  %s1, 256, %s28, [#allocation6], 128, 128, 8
    $region9: #{tpu_custom_call.1} parent=1 // pred_fallthru
      _
    // Predicated region
    $region10: #{tpu_custom_call.1} parent=1 // pred_check
      _
    $region11: #{tpu_custom_call.1} parent=1 // pred_check_branch
      %35 = sbr.rel (0) target = $region13
    $region12: #{tpu_custom_call.1} parent=1 // pred_region
      %36 = dma.done [#allocation3], 256
    $region13: #{tpu_custom_call.1} parent=1 // pred_fallthru
      _
    // Predicated region
    $region14: #{tpu_custom_call.1} parent=1 // pred_check
      _
    $region15: #{tpu_custom_call.1} parent=1 // pred_check_branch
      %38 = sbr.rel (0) target = $region17
    $region16: #{tpu_custom_call.1} parent=1 // pred_region
      %39 = dma.done [#allocation6], 256
    $region17: #{tpu_custom_call.1} parent=1 // pred_fallthru
      _
    %v40 = vld [vmem:[#allocation5] sm:$0xff]
    %v41 = vld [vmem:[#allocation5 + $0x8] sm:$0xff]
    %vm42 = vcmp.lt.u32.totalorder %v40, 2147483648
    %vm43 = vcmp.lt.u32.totalorder %v41, 2147483648
    %v44 = vld [vmem:[#allocation2] sm:$0xff]
    %v45 = vld [vmem:[#allocation2 + $0x8] sm:$0xff]
    %v46 = vmul.f32 %v44, 2.0
    %v47 = vmul.f32 %v45, 2.0
    %v48 = vsel %vm42, %v46, 0.0
    %v49 = vsel %vm43, %v47, 0.0
    %50 = vst [vmem:[#allocation7] sm:$0xff] %v48
    %51 = vst [vmem:[#allocation7 + $0x8] sm:$0xff] %v49
    // Predicated region
    $region18: #{tpu_custom_call.1} parent=1 // pred_check
      _
    $region19: #{tpu_custom_call.1} parent=1 // pred_check_branch
      %53 = sbr.rel (0) target = $region21
    $region20: #{tpu_custom_call.1} parent=1 // pred_region
      %s55 = ssub.s32 256, 256
      %56 = vsyncadd [#allocation4], %s55
      %s57 = sshll.u32 [#allocation7], 4
      %s58 = int_to_ptr.vmem [resolvable:$true] %s57
      %63 = dma.vmem_to_hbm [thread:$0]  %s58, 256, %s2, [#allocation4], 128, 128, 8
    $region21: #{tpu_custom_call.1} parent=1 // pred_fallthru
      _
    // Predicated region
    $region22: #{tpu_custom_call.1} parent=1 // pred_check
      _
    $region23: #{tpu_custom_call.1} parent=1 // pred_check_branch
      %65 = sbr.rel (0) target = $region25
    $region24: #{tpu_custom_call.1} parent=1 // pred_region
      %66 = dma.done [#allocation4], 256
    $region25: #{tpu_custom_call.1} parent=1 // pred_fallthru
      _
    %67 = vsyncpa [#allocation3], 1
    %68 = vsyncpa [#allocation6], 1
    %69 = vsyncpa [#allocation4], 1

</llo_original>
